<compile_context>
chip_gen: v7x
topology: tpu7x:2x2x1
jax: 0.10.0
libtpu: 0.0.40
codegen_flags: <defaults>
</compile_context>

<pallas_src>
import numpy as np
import jax
import jax.numpy as jnp
from jax.experimental import pallas as pl
from jax.experimental.pallas import tpu as pltpu


# ----------------------------------------------------------------------------
# Spectral helpers (glue, plain JAX). Complex64 arrays stand in for the old
# torch (real, imag)-pair representation:
#   torch.fft(x, d)  == unnormalized forward FFT over the last d signal dims
#   torch.ifft(x, d) == 1/N-normalized inverse FFT over the last d signal dims
# ----------------------------------------------------------------------------
def _spect_filter(spect, spect_size, axis):
    if spect_size is None:
        return spect
    assert isinstance(spect_size, int) and spect_size % 2 == 0 and spect_size > 2
    size = spect.shape[axis]
    gap = spect_size - size
    if gap == 0:
        return spect
    assert size % 2 == 0 and size > 2
    N = spect_size // 2 if gap < 0 else size // 2
    shape = list(spect.shape)
    shape[axis] = 1 if gap < 0 else gap + 1
    z = jnp.zeros(shape, dtype=spect.dtype)
    idx1 = [slice(None)] * spect.ndim
    idx2 = [slice(None)] * spect.ndim
    idx1[axis] = slice(0, N)
    idx2[axis] = slice(-N + 1, None)
    return jnp.concatenate([spect[tuple(idx1)], z, spect[tuple(idx2)]], axis=axis)


def spect_filter(spect, spect_size=None):
    if spect_size is None:
        return spect
    if isinstance(spect_size, int):
        spect_size = [spect_size]
    axes = list(range(-len(spect_size), 0))  # signal axes of the complex array
    for s, a in zip(spect_size, axes):
        spect = _spect_filter(spect, s, axis=a)
    return spect


def time2spect(u, signal_ndim, spect_size=None):
    if not jnp.iscomplexobj(u):
        u = u.astype(jnp.complex64)          # torch: stack([u, 0], dim=-1)
    axes = tuple(range(-signal_ndim, 0))
    spect = jnp.fft.ifftn(u, axes=axes)      # torch.ifft (normalized inverse)
    if spect_size is not None:
        assert len(spect_size) == signal_ndim
    return spect_filter(spect, spect_size)


def spect2time(spect, signal_ndim, time_size=None, isreal=True):
    if time_size is not None:
        assert len(time_size) == signal_ndim
    spect = spect_filter(spect, time_size)
    axes = tuple(range(-signal_ndim, 0))
    u = jnp.fft.fftn(spect, axes=axes)       # torch.fft (unnormalized forward)
    if isreal:
        u = u.real
    return u


# ----------------------------------------------------------------------------
# Pallas kernel: complex pointwise product c = v * u on the 3/2-padded grid.
#
# Layout (all f32):
#   u_ref / c_ref : (tb, 2*Ppad)   row = [ real plane (Ppad) | imag plane (Ppad) ]
#   v_ref         : (1,  2*Ppad)   broadcast over the tb sublane rows
# Ppad is a multiple of 128, so the column split is tile-aligned and every
# load/store is a full unmasked lane-dense access.
# ----------------------------------------------------------------------------
def _cmul_kernel(u_ref, v_ref, c_ref):
    half = u_ref.shape[-1] // 2
    ur = u_ref[:, :half]
    ui = u_ref[:, half:]
    # hoist the (1, Ppad) -> (tb, Ppad) broadcast once per operand
    vr = jnp.broadcast_to(v_ref[:, :half], ur.shape)
    vi = jnp.broadcast_to(v_ref[:, half:], ur.shape)
    # exact op order of the torch reference:
    #   c_re = v_re*u_re - v_im*u_im ; c_im = v_im*u_re + v_re*u_im
    c_ref[:, :half] = vr * ur - vi * ui
    c_ref[:, half:] = vi * ur + vr * ui


def _round_up(x, m):
    return ((x + m - 1) // m) * m


def _stack_planes(x_complex, n, P, Ppad):
    """complex (..., sig dims) -> (n, 2*Ppad) f32 = [real | imag], lane-padded."""
    # NOTE: the module works in single precision (torch float32 reference);
    # any complex128 input is explicitly narrowed to complex64 here.
    x_complex = x_complex.astype(jnp.complex64)
    xr = jnp.real(x_complex).reshape(n, P)
    xi = jnp.imag(x_complex).reshape(n, P)
    if Ppad != P:
        pad = ((0, 0), (0, Ppad - P))
        xr = jnp.pad(xr, pad)
        xi = jnp.pad(xi, pad)
    return jnp.concatenate([xr, xi], axis=-1)


def _pick_batch_tile(n, row_bytes):
    """Rows (stacked planes of `row_bytes` bytes) processed per grid step."""
    step_traffic_target = 8 * 1024 * 1024    # ~8 MiB in+out per step (v6e/v7x)
    vmem_block_cap = 24 * 1024 * 1024        # double-buffered in+out blocks
    min_step_traffic = 1 * 1024 * 1024       # don't shred steps below ~1 MiB

    tb = max(1, step_traffic_target // (2 * row_bytes))
    tb = min(tb, max(1, vmem_block_cap // (4 * row_bytes)))

    # keep >= ~8 grid steps (>= 4 per TensorCore on v7x) so DMA overlaps
    # compute, unless that would make steps smaller than ~1 MiB of traffic.
    steps_cap = -(-n // 8)
    if steps_cap * 2 * row_bytes >= min_step_traffic:
        tb = min(tb, steps_cap)

    tb = min(tb, n)
    if tb < n:
        # block rows must be sublane-aligned (multiple of 8) unless == n
        tb = min(max(8, (tb // 8) * 8), n)
    return int(tb)


def complex_mul_pallas(v_stacked, u, signal_ndim):
    """c = v * u (complex, pointwise over the last `signal_ndim` dims).

    v_stacked: (1, 2*Ppad) f32, precomputed [real | imag] row of the fixed v.
    u:         complex, shape (..., *sig_shape) with prod(sig_shape) <= Ppad.
    """
    sig_shape = u.shape[-signal_ndim:]
    lead = u.shape[:-signal_ndim]
    P = int(np.prod(sig_shape))
    n = int(np.prod(lead)) if lead else 1
    Ppad = v_stacked.shape[-1] // 2
    assert Ppad >= P and Ppad % 128 == 0

    us = _stack_planes(u, n, P, Ppad)                 # (n, 2*Ppad) f32
    row_bytes = 2 * Ppad * 4
    tb = _pick_batch_tile(n, row_bytes)
    grid = (pl.cdiv(n, tb),)

    u_spec = pl.BlockSpec((tb, 2 * Ppad), lambda i: (i, 0))
    v_spec = pl.BlockSpec((1, 2 * Ppad), lambda i: (0, 0))

    cs = pl.pallas_call(
        _cmul_kernel,
        grid=grid,
        in_specs=[u_spec, v_spec],
        out_specs=u_spec,
        out_shape=jax.ShapeDtypeStruct((n, 2 * Ppad), jnp.float32),
        compiler_params=pltpu.CompilerParams(
            dimension_semantics=("parallel",),
            # let XLA fuse the real/imag split + pad/concat into the u operand
            # (each element is read exactly once by the grid); keep the tiny,
            # precomputed v materialized.
            allow_input_fusion=[True, False],
            # explicit scoped-VMEM limit: block footprint is capped at ~24 MiB,
            # 48 MiB leaves headroom and stays under v7x's 64 MiB physical.
            vmem_limit_bytes=48 * 1024 * 1024,
        ),
        cost_estimate=pl.CostEstimate(
            flops=6 * n * Ppad,
            transcendentals=0,
            bytes_accessed=2 * n * row_bytes + row_bytes,
        ),
    )(us, v_stacked)

    # TODO(synk): no complex bitcast / complex Pallas refs in JAX yet, so one
    # recombine pass (and the split above, when not fused) remains.
    c = jax.lax.complex(cs[:, :P], cs[:, Ppad:Ppad + P])
    return c.reshape(lead + sig_shape)


# ----------------------------------------------------------------------------
# Module
# ----------------------------------------------------------------------------
class SpectMulFixV:
    """JAX/Pallas port of SpectMulFixV (fixed-v dealiased spectral multiply)."""

    def __init__(self, v, signal_ndim):
        v = jnp.asarray(v, dtype=jnp.float32)
        assert v.ndim == signal_ndim  # v = (H, W) for signal_ndim = 2
        self.signal_ndim = signal_ndim
        self.size = [int(v.shape[i]) for i in range(-signal_ndim, 0)]
        self.spect_size = [3 * int(v.shape[i]) // 2 for i in range(-signal_ndim, 0)]
        _v = time2spect(v, signal_ndim, self.spect_size)
        # NOTE: keep the imaginary plane (isreal=False). The complex pointwise
        # product in forward() needs both planes (3/2-rule dealiasing); the
        # transcribed default isreal=True would drop it and make the complex
        # multiply / subsequent 2-D FFT ill-formed.
        _v = spect2time(_v, signal_ndim, isreal=False)
        self.aug_v = _v                                   # complex64, 3/2-grid
        # Precompute the kernel-side layout of the fixed v once.
        P = int(np.prod(self.spect_size))
        self.Ppad = _round_up(P, 128)
        self.aug_v_stacked = _stack_planes(_v, 1, P, self.Ppad)   # (1, 2*Ppad)

    def __call__(self, u, isreal=True, spect_or_real='real'):
        if spect_or_real is None:
            spect_or_real = 'spect'
        if spect_or_real.upper() == 'REAL':
            u = time2spect(u, self.signal_ndim, self.spect_size)
        else:
            assert jnp.iscomplexobj(u)
            u = spect_filter(u, self.spect_size)
        u = spect2time(u, self.signal_ndim, isreal=False)   # complex, padded grid
        # --- Pallas hot path: complex pointwise multiply with fixed aug_v ---
        c = complex_mul_pallas(self.aug_v_stacked, u, self.signal_ndim)
        c = time2spect(c, self.signal_ndim, self.size)       # truncate spectrum
        c = spect2time(c, self.signal_ndim, isreal=isreal)
        return c


if __name__ == "__main__":
    key = jax.random.PRNGKey(0)
    kv, ku = jax.random.split(key)
    B, C, H, W = 2, 4, 16, 16
    # layout: u is NCHW (FFT over the trailing H, W), v is (H, W)
    v = jax.random.normal(kv, (H, W), dtype=jnp.float32)
    u = jax.random.normal(ku, (B, C, H, W), dtype=jnp.float32)

    mod = SpectMulFixV(v, signal_ndim=2)
    out = jax.block_until_ready(mod(u))           # isreal=True -> real output
    assert out.shape == (B, C, H, W), out.shape
    assert out.dtype == jnp.float32, out.dtype

    # sanity: Pallas complex multiply vs plain jnp on identical operands
    up = spect2time(time2spect(u, 2, mod.spect_size), 2, isreal=False)
    c_pl = jax.block_until_ready(complex_mul_pallas(mod.aug_v_stacked, up, 2))
    c_ref = mod.aug_v * up
    assert bool(jnp.allclose(c_pl, c_ref, rtol=1e-4, atol=1e-4))

    print("KERNEL_OK")
</pallas_src>

<mosaic_0001>
module attributes {stable_mosaic.version = 11 : i64} {
  func.func @_cmul_kernel(%arg0: i32, %arg1: memref<8x1280xf32, #tpu.memory_space<vmem>>, %arg2: memref<1x1280xf32, #tpu.memory_space<vmem>>, %arg3: memref<8x1280xf32, #tpu.memory_space<vmem>>) attributes {dimension_semantics = [#tpu.dimension_semantics<parallel>], iteration_bounds = array<i64: 1>, scalar_prefetch = 0 : i64, scratch_operands = 0 : i64, tpu.core_type = #tpu.core_type<tc>, window_params = [{transform_indices = @transform_0, window_bounds = array<i64: 8, 1280>}, {pipeline_mode = #tpu.pipeline_mode<synchronous>, transform_indices = @transform_1, window_bounds = array<i64: 1, 1280>}, {transform_indices = @transform_2, window_bounds = array<i64: 8, 1280>}]} {
    %c0 = arith.constant 0 : index
    %c0_0 = arith.constant 0 : index
    %0 = vector.load %arg1[%c0, %c0_0] : memref<8x1280xf32, #tpu.memory_space<vmem>>, vector<8x640xf32>
    %c0_1 = arith.constant 0 : index
    %c640 = arith.constant 640 : index
    %1 = vector.load %arg1[%c0_1, %c640] : memref<8x1280xf32, #tpu.memory_space<vmem>>, vector<8x640xf32>
    %c0_2 = arith.constant 0 : index
    %c0_3 = arith.constant 0 : index
    %2 = vector.load %arg2[%c0_2, %c0_3] : memref<1x1280xf32, #tpu.memory_space<vmem>>, vector<1x640xf32>
    %3 = vector.shape_cast %2 : vector<1x640xf32> to vector<1x640xf32>
    %4 = vector.broadcast %3 : vector<1x640xf32> to vector<8x640xf32>
    %c0_4 = arith.constant 0 : index
    %c640_5 = arith.constant 640 : index
    %5 = vector.load %arg2[%c0_4, %c640_5] : memref<1x1280xf32, #tpu.memory_space<vmem>>, vector<1x640xf32>
    %6 = vector.shape_cast %5 : vector<1x640xf32> to vector<1x640xf32>
    %7 = vector.broadcast %6 : vector<1x640xf32> to vector<8x640xf32>
    %8 = arith.mulf %4, %0 : vector<8x640xf32>
    %9 = arith.mulf %7, %1 : vector<8x640xf32>
    %10 = arith.subf %8, %9 : vector<8x640xf32>
    %c0_6 = arith.constant 0 : index
    %c0_7 = arith.constant 0 : index
    %11 = vector.load %arg3[%c0_6, %c0_7] : memref<8x1280xf32, #tpu.memory_space<vmem>>, vector<8x640xf32>
    tpu.vector_store %arg3[%c0_6, %c0_7], %10 {strides = array<i32>} : memref<8x1280xf32, #tpu.memory_space<vmem>>, vector<8x640xf32>,
    %12 = arith.mulf %7, %0 : vector<8x640xf32>
    %13 = arith.mulf %4, %1 : vector<8x640xf32>
    %14 = arith.addf %12, %13 : vector<8x640xf32>
    %c0_8 = arith.constant 0 : index
    %c640_9 = arith.constant 640 : index
    %15 = vector.load %arg3[%c0_8, %c640_9] : memref<8x1280xf32, #tpu.memory_space<vmem>>, vector<8x640xf32>
    tpu.vector_store %arg3[%c0_8, %c640_9], %14 {strides = array<i32>} : memref<8x1280xf32, #tpu.memory_space<vmem>>, vector<8x640xf32>,
    return
  }
  func.func @transform_0(%arg0: i32) -> (i32, i32) {
    %c0_i32 = arith.constant 0 : i32
    %c0_i32_0 = arith.constant 0 : i32
    return %arg0, %c0_i32 : i32, i32
  }
  func.func @transform_1(%arg0: i32) -> (i32, i32) {
    %c0_i32 = arith.constant 0 : i32
    %c0_i32_0 = arith.constant 0 : i32
    %c0_i32_1 = arith.constant 0 : i32
    return %c0_i32, %c0_i32_0 : i32, i32
  }
  func.func @transform_2(%arg0: i32) -> (i32, i32) {
    %c0_i32 = arith.constant 0 : i32
    %c0_i32_0 = arith.constant 0 : i32
    return %arg0, %c0_i32 : i32, i32
  }
}

</mosaic_0001>

<llo_original>
// kernel: tpu_custom_call.1
$region0: #{tpu_custom_call.1}
  #allocation0 [shape = 'u32[]', space=smem, size = 0x4, offset = 0x4, fixed_abs, tag = 'smem constant byte address 0x4 - core index']
  #allocation1 [shape = 'u32[144,128]{1,0:T(1,128)}', space=vmem, size = 0x12000, scoped, tag = 'internal scratch']
  %s0 = inlined_call_operand.hbm [shape: f32[8,1280], index: 0, kind: input, shape index: {}]
  %s1 = inlined_call_operand.hbm [shape: f32[1,1280], index: 1, kind: input, shape index: {}]
  %s2 = inlined_call_operand.hbm [shape: f32[8,1280], index: 2, kind: output, shape index: {}]
  %s3 = sld [smem:[#allocation0]]
  $region26: #{tpu_custom_call.1} parent=0
    _
  %s5 = ssub.s32 1, %s3
  %s6 = scalar_select 0, %s5, %s3
  $region1: #{tpu_custom_call.1} parent=0
    #allocation2 [shape = 'u8[40960]{0}', space=vmem, size = 0xa000, scoped, tag = 'input window, operand 0, single buffered']
    #allocation3 [shape = 's32[1]{0}', space=sflag, size = 0x4, scoped, tag = 'scoped memory for tpu_custom_call.1']
    #allocation4 [shape = 's32[1]{0}', space=sflag, size = 0x4, scoped, tag = 'scoped memory for tpu_custom_call.1']
    #allocation5 [shape = 'u8[5120]{0}', space=vmem, size = 0x1400, scoped, tag = 'input window, operand 1, single buffered']
    #allocation6 [shape = 's32[1]{0}', space=sflag, size = 0x4, scoped, tag = 'scoped memory for tpu_custom_call.1']
    #allocation7 [shape = 'u8[40960]{0}', space=vmem, size = 0xa000, scoped, tag = 'output window, operand 0, single buffered']
    %7 = vsyncpa [#allocation3], 0
    %8 = vsyncpa [#allocation6], 0
    %9 = vsyncpa [#allocation4], 0
    // Predicated region
    $region2: #{tpu_custom_call.1} parent=1 // pred_check
      _
    $region3: #{tpu_custom_call.1} parent=1 // pred_check_branch
      %11 = sbr.rel (0) target = $region5
    $region4: #{tpu_custom_call.1} parent=1 // pred_region
      %s13 = ssub.s32 1280, 1280
      %14 = vsyncadd [#allocation3], %s13
      %s16 = sshll.u32 [#allocation2], 4
      %s17 = int_to_ptr.vmem [resolvable:$true] %s16
      %19 = dma.hbm_to_vmem [thread:$0]  %s0, 1280, %s17, [#allocation3]
    $region5: #{tpu_custom_call.1} parent=1 // pred_fallthru
      _
    // Predicated region
    $region6: #{tpu_custom_call.1} parent=1 // pred_check
      _
    $region7: #{tpu_custom_call.1} parent=1 // pred_check_branch
      %21 = sbr.rel (0) target = $region9
    $region8: #{tpu_custom_call.1} parent=1 // pred_region
      %s23 = ssub.s32 160, 160
      %24 = vsyncadd [#allocation6], %s23
      %s26 = sshll.u32 [#allocation5], 4
      %s27 = int_to_ptr.vmem [resolvable:$true] %s26
      %29 = dma.hbm_to_vmem [thread:$0]  %s1, 160, %s27, [#allocation6]
    $region9: #{tpu_custom_call.1} parent=1 // pred_fallthru
      _
    // Predicated region
    $region10: #{tpu_custom_call.1} parent=1 // pred_check
      _
    $region11: #{tpu_custom_call.1} parent=1 // pred_check_branch
      %31 = sbr.rel (0) target = $region13
    $region12: #{tpu_custom_call.1} parent=1 // pred_region
      %32 = dma.done [#allocation3], 1280
    $region13: #{tpu_custom_call.1} parent=1 // pred_fallthru
      _
    // Predicated region
    $region14: #{tpu_custom_call.1} parent=1 // pred_check
      _
    $region15: #{tpu_custom_call.1} parent=1 // pred_check_branch
      %34 = sbr.rel (0) target = $region17
    $region16: #{tpu_custom_call.1} parent=1 // pred_region
      %35 = dma.done [#allocation6], 160
    $region17: #{tpu_custom_call.1} parent=1 // pred_fallthru
      _
    %v36 = vld [vmem:[#allocation2] sm:$0xff]
    %v37 = vld [vmem:[#allocation2 + $0x8] sm:$0xff]
    %v38 = vld [vmem:[#allocation2 + $0x10] sm:$0xff]
    %v39 = vld [vmem:[#allocation2 + $0x18] sm:$0xff]
    %v40 = vld [vmem:[#allocation2 + $0x20] sm:$0xff]
    %v41 = vld [vmem:[#allocation2 + $0x28] sm:$0xff]
    %v42 = vld [vmem:[#allocation2 + $0x30] sm:$0xff]
    %v43 = vld [vmem:[#allocation2 + $0x38] sm:$0xff]
    %v44 = vld [vmem:[#allocation2 + $0x40] sm:$0xff]
    %v45 = vld [vmem:[#allocation2 + $0x48] sm:$0xff]
    %v46 = vld [vmem:[#allocation5] sm:$0x1f]
    %v48 = vlaneseq
    %v49 = vshrl.u32 %v48, 7
    %v50 = vsub.s32 0, %v49
    %v51 = vrot.slane %v46, %v50
    %v52 = vlaneseq
    %v53 = vshrl.u32 %v52, 7
    %v54 = vsub.s32 1, %v53
    %v55 = vrot.slane %v46, %v54
    %v56 = vlaneseq
    %v57 = vshrl.u32 %v56, 7
    %v58 = vsub.s32 2, %v57
    %v59 = vrot.slane %v46, %v58
    %v60 = vlaneseq
    %v61 = vshrl.u32 %v60, 7
    %v62 = vsub.s32 3, %v61
    %v63 = vrot.slane %v46, %v62
    %v64 = vlaneseq
    %v65 = vshrl.u32 %v64, 7
    %v66 = vsub.s32 4, %v65
    %v67 = vrot.slane %v46, %v66
    %v73 = vld [vmem:[#allocation5 + $0x5] sm:$0x1f]
    %v75 = vlaneseq
    %v76 = vshrl.u32 %v75, 7
    %v77 = vsub.s32 0, %v76
    %v78 = vrot.slane %v73, %v77
    %v79 = vlaneseq
    %v80 = vshrl.u32 %v79, 7
    %v81 = vsub.s32 1, %v80
    %v82 = vrot.slane %v73, %v81
    %v83 = vlaneseq
    %v84 = vshrl.u32 %v83, 7
    %v85 = vsub.s32 2, %v84
    %v86 = vrot.slane %v73, %v85
    %v87 = vlaneseq
    %v88 = vshrl.u32 %v87, 7
    %v89 = vsub.s32 3, %v88
    %v90 = vrot.slane %v73, %v89
    %v91 = vlaneseq
    %v92 = vshrl.u32 %v91, 7
    %v93 = vsub.s32 4, %v92
    %v94 = vrot.slane %v73, %v93
    %v100 = vmul.f32 %v51, %v36
    %v101 = vmul.f32 %v55, %v37
    %v102 = vmul.f32 %v59, %v38
    %v103 = vmul.f32 %v63, %v39
    %v104 = vmul.f32 %v67, %v40
    %v105 = vmul.f32 %v78, %v41
    %v106 = vmul.f32 %v82, %v42
    %v107 = vmul.f32 %v86, %v43
    %v108 = vmul.f32 %v90, %v44
    %v109 = vmul.f32 %v94, %v45
    %v110 = vsub.f32 %v100, %v105
    %v111 = vsub.f32 %v101, %v106
    %v112 = vsub.f32 %v102, %v107
    %v113 = vsub.f32 %v103, %v108
    %v114 = vsub.f32 %v104, %v109
    %115 = vst [vmem:[#allocation7] sm:$0xff] %v110
    %116 = vst [vmem:[#allocation7 + $0x8] sm:$0xff] %v111
    %117 = vst [vmem:[#allocation7 + $0x10] sm:$0xff] %v112
    %118 = vst [vmem:[#allocation7 + $0x18] sm:$0xff] %v113
    %119 = vst [vmem:[#allocation7 + $0x20] sm:$0xff] %v114
    %v120 = vmul.f32 %v78, %v36
    %v121 = vmul.f32 %v82, %v37
    %v122 = vmul.f32 %v86, %v38
    %v123 = vmul.f32 %v90, %v39
    %v124 = vmul.f32 %v94, %v40
    %v125 = vmul.f32 %v51, %v41
    %v126 = vmul.f32 %v55, %v42
    %v127 = vmul.f32 %v59, %v43
    %v128 = vmul.f32 %v63, %v44
    %v129 = vmul.f32 %v67, %v45
    %v130 = vadd.f32 %v120, %v125
    %v131 = vadd.f32 %v121, %v126
    %v132 = vadd.f32 %v122, %v127
    %v133 = vadd.f32 %v123, %v128
    %v134 = vadd.f32 %v124, %v129
    %135 = vst [vmem:[#allocation7 + $0x28] sm:$0xff] %v130
    %136 = vst [vmem:[#allocation7 + $0x30] sm:$0xff] %v131
    %137 = vst [vmem:[#allocation7 + $0x38] sm:$0xff] %v132
    %138 = vst [vmem:[#allocation7 + $0x40] sm:$0xff] %v133
    %139 = vst [vmem:[#allocation7 + $0x48] sm:$0xff] %v134
    // Predicated region
    $region18: #{tpu_custom_call.1} parent=1 // pred_check
      _
    $region19: #{tpu_custom_call.1} parent=1 // pred_check_branch
      %141 = sbr.rel (0) target = $region21
    $region20: #{tpu_custom_call.1} parent=1 // pred_region
      %s143 = ssub.s32 1280, 1280
      %144 = vsyncadd [#allocation4], %s143
      %s146 = sshll.u32 [#allocation7], 4
      %s147 = int_to_ptr.vmem [resolvable:$true] %s146
      %149 = dma.vmem_to_hbm [thread:$0]  %s147, 1280, %s2, [#allocation4]
    $region21: #{tpu_custom_call.1} parent=1 // pred_fallthru
      _
    // Predicated region
    $region22: #{tpu_custom_call.1} parent=1 // pred_check
      _
    $region23: #{tpu_custom_call.1} parent=1 // pred_check_branch
      %151 = sbr.rel (0) target = $region25
    $region24: #{tpu_custom_call.1} parent=1 // pred_region
      %152 = dma.done [#allocation4], 1280
    $region25: #{tpu_custom_call.1} parent=1 // pred_fallthru
      _
    %153 = vsyncpa [#allocation3], 1
    %154 = vsyncpa [#allocation6], 1
    %155 = vsyncpa [#allocation4], 1

</llo_original>
